<compile_context>
chip_gen: v6e
topology: v6e:2x2x1
jax: 0.10.0
libtpu: 0.0.40
codegen_flags: <defaults>
</compile_context>

<pallas_src>
import functools

import jax
import jax.numpy as jnp
from jax import lax
from jax.experimental import pallas as pl
from jax.experimental.pallas import tpu as pltpu


# ---------------------------------------------------------------------------
# In-kernel helpers
# ---------------------------------------------------------------------------
def _stable_softplus(rho):
    # torch: log(1 + exp(rho)); bit-identical for rho <= 20, no inf overflow above.
    return jnp.where(rho > 20.0, rho, jnp.log1p(jnp.exp(jnp.minimum(rho, 20.0))))


def _sigmoid(h):
    # tanh form keeps the activation on the EUP (no multi-cycle VPU divide).
    return 0.5 * (jnp.tanh(0.5 * h) + 1.0)


# ---------------------------------------------------------------------------
# Fused kernel: Bayesian resample + 3-layer MLP over one batch tile.
# ---------------------------------------------------------------------------
def _mlp_bbb_fused_kernel(
        x_ref,
        w1mu, w1rho, w1eps, b1mu, b1rho, b1eps,
        w2mu, w2rho, w2eps, b2mu, b2rho, b2eps,
        w3mu, w3rho, w3eps, b3mu, b3rho, b3eps,
        out_ref, *, compute_dtype):
    # Contract last axis of both operands: x[.., in] . w[out, in] == x @ w.T
    # (weights stay in the native torch [out, in] layout -> no wrapper transposes).
    dn = (((1,), (1,)), ((), ()))

    def sample(mu_ref, rho_ref, eps_ref):
        return mu_ref[...] + _stable_softplus(rho_ref[...]) * eps_ref[...]

    x = x_ref[...].astype(compute_dtype)

    # layer 1: Bayesian linear + sigmoid
    w1 = sample(w1mu, w1rho, w1eps).astype(compute_dtype)
    h = lax.dot_general(x, w1, dn, preferred_element_type=jnp.float32)
    h = _sigmoid(h + sample(b1mu, b1rho, b1eps))

    # layer 2: Bayesian linear + sigmoid
    w2 = sample(w2mu, w2rho, w2eps).astype(compute_dtype)
    h = lax.dot_general(h.astype(compute_dtype), w2, dn,
                        preferred_element_type=jnp.float32)
    h = _sigmoid(h + sample(b2mu, b2rho, b2eps))

    # output layer (out_features == 1): produce a lane-dense [1, tb] row
    w3 = sample(w3mu, w3rho, w3eps).astype(compute_dtype)
    o = lax.dot_general(w3, h.astype(compute_dtype), dn,
                        preferred_element_type=jnp.float32)            # [1, tb]
    out_ref[...] = (o + sample(b3mu, b3rho, b3eps)).astype(out_ref.dtype)


# ---------------------------------------------------------------------------
# Wrapper
# ---------------------------------------------------------------------------
def _round_up(x, m):
    return ((x + m - 1) // m) * m


def _vmem_limit_bytes():
    default_cap = 64 * 1024 * 1024                     # v7x physical (smallest)
    try:
        cap = getattr(pltpu.get_tpu_info(), "vmem_capacity_bytes", default_cap)
    except Exception:
        cap = default_cap
    # leave headroom for compiler scratch; cap at 100 MiB on big-VMEM parts.
    return int(min(100 * 1024 * 1024, cap * 3 // 4))


def _choose_batch_tile(B, batch_tile):
    if B <= 128:
        # Single full block: block_shape == array shape, so no (8,128)
        # alignment constraint is triggered and no padding is needed.
        return B
    # >= 2 grid steps (v7x has 2 TensorCores); multiple of 128 for unmasked
    # lane-dense output stores and sublane-aligned MXU tiles.
    tb = min(_round_up(batch_tile, 128), _round_up(pl.cdiv(B, 2), 128))
    return max(tb, 128)


def mlp_bayesian_by_backprop_forward(x, params, eps, *,
                                     compute_dtype=jnp.float32,
                                     batch_tile=2048,
                                     weight_buffer_count=None):
    """x: [B, input_dim] f32.  params/eps: dicts of per-layer tensors in the
    torch layout (w_* are [out, in], b_* are [out]).  Returns [B, 1] f32.

    compute_dtype: dtype of the matmul operands (jnp.bfloat16 on v6e/v7x for
    ~2x MXU rate + half the weight bytes; sampling/accumulation stay f32).
    weight_buffer_count: set to 1 on v7x with large hidden_dim to single-buffer
    the VMEM-resident parameter blocks (default pipelining otherwise).
    """
    B, input_dim = x.shape
    hidden_dim = params["hidden1.w_mu"].shape[0]

    def bias2d(t):
        return t.reshape(1, -1)

    layer_args = []
    layer_shapes = []
    for name, out_d, in_d in (("hidden1", hidden_dim, input_dim),
                              ("hidden2", hidden_dim, hidden_dim),
                              ("out", 1, hidden_dim)):
        layer_args += [
            params[f"{name}.w_mu"], params[f"{name}.w_rho"], eps[f"{name}.w_eps"],
            bias2d(params[f"{name}.b_mu"]), bias2d(params[f"{name}.b_rho"]),
            bias2d(eps[f"{name}.b_eps"]),
        ]
        layer_shapes += [(out_d, in_d)] * 3 + [(1, out_d)] * 3

    tb = _choose_batch_tile(B, batch_tile)
    grid = (pl.cdiv(B, tb),)          # ragged tail handled as a partial block

    def const_spec(shape):
        # Constant block index -> parameter stays VMEM-resident across tiles.
        if weight_buffer_count is None:
            return pl.BlockSpec(shape, lambda i: (0, 0))
        return pl.BlockSpec(shape, lambda i: (0, 0),
                            pipeline_mode=pl.Buffered(weight_buffer_count))

    in_specs = [pl.BlockSpec((tb, input_dim), lambda i: (i, 0))]        # x tile
    in_specs += [const_spec(s) for s in layer_shapes]                   # params

    out_row = pl.pallas_call(
        functools.partial(_mlp_bbb_fused_kernel, compute_dtype=compute_dtype),
        grid=grid,
        out_shape=jax.ShapeDtypeStruct((1, B), jnp.float32),
        in_specs=in_specs,
        out_specs=pl.BlockSpec((1, tb), lambda i: (0, i)),              # lane-dense
        compiler_params=pltpu.CompilerParams(
            dimension_semantics=("parallel",),
            vmem_limit_bytes=_vmem_limit_bytes(),
        ),
    )(x, *layer_args)

    # (1, B) -> (B, 1): pure reshape (same linear order), B*4 bytes.
    return out_row.reshape(B, 1)


# ---------------------------------------------------------------------------
# Pure-JAX reference mirroring the torch forward.
# ---------------------------------------------------------------------------
def _reference_forward(x, params, eps):
    def bayes_linear(name, h):
        w = params[f"{name}.w_mu"] + jnp.log1p(
            jnp.exp(params[f"{name}.w_rho"])) * eps[f"{name}.w_eps"]
        b = params[f"{name}.b_mu"] + jnp.log1p(
            jnp.exp(params[f"{name}.b_rho"])) * eps[f"{name}.b_eps"]
        return h @ w.T + b

    h = jax.nn.sigmoid(bayes_linear("hidden1", x))
    h = jax.nn.sigmoid(bayes_linear("hidden2", h))
    return bayes_linear("out", h)


if __name__ == "__main__":
    B, input_dim, hidden_dim = 8, 16, 32

    key = jax.random.PRNGKey(0)
    keys = jax.random.split(key, 16)

    # Deterministic parameter init (torch inits these to zero; small deterministic
    # values make the test non-trivial).
    def init_layer(kw, kb, in_dim, out_dim, name):
        return {
            f"{name}.w_mu": 0.1 * jax.random.normal(kw, (out_dim, in_dim), jnp.float32),
            f"{name}.w_rho": -2.0 + 0.1 * jax.random.normal(
                jax.random.fold_in(kw, 1), (out_dim, in_dim), jnp.float32),
            f"{name}.b_mu": 0.1 * jax.random.normal(kb, (out_dim,), jnp.float32),
            f"{name}.b_rho": -2.0 + 0.1 * jax.random.normal(
                jax.random.fold_in(kb, 1), (out_dim,), jnp.float32),
        }

    params = {}
    params.update(init_layer(keys[0], keys[1], input_dim, hidden_dim, "hidden1"))
    params.update(init_layer(keys[2], keys[3], hidden_dim, hidden_dim, "hidden2"))
    params.update(init_layer(keys[4], keys[5], hidden_dim, 1, "out"))

    # Deterministic Normal(0,1) epsilon samples (the stochastic part of the forward).
    eps = {
        "hidden1.w_eps": jax.random.normal(keys[6], (hidden_dim, input_dim), jnp.float32),
        "hidden1.b_eps": jax.random.normal(keys[7], (hidden_dim,), jnp.float32),
        "hidden2.w_eps": jax.random.normal(keys[8], (hidden_dim, hidden_dim), jnp.float32),
        "hidden2.b_eps": jax.random.normal(keys[9], (hidden_dim,), jnp.float32),
        "out.w_eps": jax.random.normal(keys[10], (1, hidden_dim), jnp.float32),
        "out.b_eps": jax.random.normal(keys[11], (1,), jnp.float32),
    }

    # --- check 1: small batch (single full block, no padding/tiling) ---
    x = jax.random.normal(keys[12], (B, input_dim), jnp.float32)
    out = jax.block_until_ready(mlp_bayesian_by_backprop_forward(x, params, eps))
    ref = jax.block_until_ready(_reference_forward(x, params, eps))
    assert out.shape == (B, 1), out.shape
    assert jnp.allclose(out, ref, atol=2e-5, rtol=1e-5), (out, ref)

    # --- check 2: batch larger than the tile, ragged tail (3 tiles of 128) ---
    B2 = 300
    x2 = jax.random.normal(keys[13], (B2, input_dim), jnp.float32)
    out2 = jax.block_until_ready(
        mlp_bayesian_by_backprop_forward(x2, params, eps, batch_tile=128))
    ref2 = jax.block_until_ready(_reference_forward(x2, params, eps))
    assert out2.shape == (B2, 1), out2.shape
    assert jnp.allclose(out2, ref2, atol=2e-5, rtol=1e-5), (out2, ref2)

    # --- check 3: default batch_tile path (2 tiles of 256, last partial) ---
    out3 = jax.block_until_ready(mlp_bayesian_by_backprop_forward(x2, params, eps))
    assert out3.shape == (B2, 1), out3.shape
    assert jnp.allclose(out3, ref2, atol=2e-5, rtol=1e-5), (out3, ref2)

    print("KERNEL_OK")
</pallas_src>

<mosaic_0001>
module attributes {stable_mosaic.version = 11 : i64} {
  func.func @_mlp_bbb_fused_kernel(%arg0: i32, %arg1: memref<8x16xf32, #tpu.memory_space<vmem>>, %arg2: memref<32x16xf32, #tpu.memory_space<vmem>>, %arg3: memref<32x16xf32, #tpu.memory_space<vmem>>, %arg4: memref<32x16xf32, #tpu.memory_space<vmem>>, %arg5: memref<1x32xf32, #tpu.memory_space<vmem>>, %arg6: memref<1x32xf32, #tpu.memory_space<vmem>>, %arg7: memref<1x32xf32, #tpu.memory_space<vmem>>, %arg8: memref<32x32xf32, #tpu.memory_space<vmem>>, %arg9: memref<32x32xf32, #tpu.memory_space<vmem>>, %arg10: memref<32x32xf32, #tpu.memory_space<vmem>>, %arg11: memref<1x32xf32, #tpu.memory_space<vmem>>, %arg12: memref<1x32xf32, #tpu.memory_space<vmem>>, %arg13: memref<1x32xf32, #tpu.memory_space<vmem>>, %arg14: memref<1x32xf32, #tpu.memory_space<vmem>>, %arg15: memref<1x32xf32, #tpu.memory_space<vmem>>, %arg16: memref<1x32xf32, #tpu.memory_space<vmem>>, %arg17: memref<1x1xf32, #tpu.memory_space<vmem>>, %arg18: memref<1x1xf32, #tpu.memory_space<vmem>>, %arg19: memref<1x1xf32, #tpu.memory_space<vmem>>, %arg20: memref<1x8xf32, #tpu.memory_space<vmem>>) attributes {dimension_semantics = [#tpu.dimension_semantics<parallel>], iteration_bounds = array<i64: 1>, scalar_prefetch = 0 : i64, scratch_operands = 0 : i64, tpu.core_type = #tpu.core_type<tc>, window_params = [{transform_indices = @transform_0, window_bounds = array<i64: 8, 16>}, {pipeline_mode = #tpu.pipeline_mode<synchronous>, transform_indices = @transform_1, window_bounds = array<i64: 32, 16>}, {pipeline_mode = #tpu.pipeline_mode<synchronous>, transform_indices = @transform_2, window_bounds = array<i64: 32, 16>}, {pipeline_mode = #tpu.pipeline_mode<synchronous>, transform_indices = @transform_3, window_bounds = array<i64: 32, 16>}, {pipeline_mode = #tpu.pipeline_mode<synchronous>, transform_indices = @transform_4, window_bounds = array<i64: 1, 32>}, {pipeline_mode = #tpu.pipeline_mode<synchronous>, transform_indices = @transform_5, window_bounds = array<i64: 1, 32>}, {pipeline_mode = #tpu.pipeline_mode<synchronous>, transform_indices = @transform_6, window_bounds = array<i64: 1, 32>}, {pipeline_mode = #tpu.pipeline_mode<synchronous>, transform_indices = @transform_7, window_bounds = array<i64: 32, 32>}, {pipeline_mode = #tpu.pipeline_mode<synchronous>, transform_indices = @transform_8, window_bounds = array<i64: 32, 32>}, {pipeline_mode = #tpu.pipeline_mode<synchronous>, transform_indices = @transform_9, window_bounds = array<i64: 32, 32>}, {pipeline_mode = #tpu.pipeline_mode<synchronous>, transform_indices = @transform_10, window_bounds = array<i64: 1, 32>}, {pipeline_mode = #tpu.pipeline_mode<synchronous>, transform_indices = @transform_11, window_bounds = array<i64: 1, 32>}, {pipeline_mode = #tpu.pipeline_mode<synchronous>, transform_indices = @transform_12, window_bounds = array<i64: 1, 32>}, {pipeline_mode = #tpu.pipeline_mode<synchronous>, transform_indices = @transform_13, window_bounds = array<i64: 1, 32>}, {pipeline_mode = #tpu.pipeline_mode<synchronous>, transform_indices = @transform_14, window_bounds = array<i64: 1, 32>}, {pipeline_mode = #tpu.pipeline_mode<synchronous>, transform_indices = @transform_15, window_bounds = array<i64: 1, 32>}, {pipeline_mode = #tpu.pipeline_mode<synchronous>, transform_indices = @transform_16, window_bounds = array<i64: 1, 1>}, {pipeline_mode = #tpu.pipeline_mode<synchronous>, transform_indices = @transform_17, window_bounds = array<i64: 1, 1>}, {pipeline_mode = #tpu.pipeline_mode<synchronous>, transform_indices = @transform_18, window_bounds = array<i64: 1, 1>}, {transform_indices = @transform_19, window_bounds = array<i64: 1, 8>}]} {
    %c0 = arith.constant 0 : index
    %c0_0 = arith.constant 0 : index
    %0 = vector.load %arg1[%c0, %c0_0] : memref<8x16xf32, #tpu.memory_space<vmem>>, vector<8x16xf32>
    %c0_1 = arith.constant 0 : index
    %c0_2 = arith.constant 0 : index
    %1 = vector.load %arg2[%c0_1, %c0_2] : memref<32x16xf32, #tpu.memory_space<vmem>>, vector<32x16xf32>
    %c0_3 = arith.constant 0 : index
    %c0_4 = arith.constant 0 : index
    %2 = vector.load %arg3[%c0_3, %c0_4] : memref<32x16xf32, #tpu.memory_space<vmem>>, vector<32x16xf32>
    %cst = arith.constant 2.000000e+01 : f32
    %3 = vector.broadcast %cst : f32 to vector<32x16xf32>
    %4 = arith.cmpf ogt, %2, %3 : vector<32x16xf32>
    %cst_5 = arith.constant 2.000000e+01 : f32
    %5 = vector.broadcast %cst_5 : f32 to vector<32x16xf32>
    %6 = arith.minimumf %2, %5 : vector<32x16xf32>
    %7 = math.exp %6 : vector<32x16xf32>
    %8 = math.log1p %7 : vector<32x16xf32>
    %9 = arith.select %4, %2, %8 : vector<32x16xi1>, vector<32x16xf32>
    %c0_6 = arith.constant 0 : index
    %c0_7 = arith.constant 0 : index
    %10 = vector.load %arg4[%c0_6, %c0_7] : memref<32x16xf32, #tpu.memory_space<vmem>>, vector<32x16xf32>
    %11 = arith.mulf %9, %10 : vector<32x16xf32>
    %12 = arith.addf %1, %11 : vector<32x16xf32>
    %cst_8 = arith.constant dense<0.000000e+00> : vector<8x32xf32>
    %13 = tpu.matmul %0, %12, %cst_8 {dimension_numbers = #tpu.dot_dimension_numbers<[1], [1], [0], [0], [0, 0, 1, 0], [], []>} : vector<8x16xf32>, vector<32x16xf32>, vector<8x32xf32> -> vector<8x32xf32>
    %c0_9 = arith.constant 0 : index
    %c0_10 = arith.constant 0 : index
    %14 = vector.load %arg5[%c0_9, %c0_10] : memref<1x32xf32, #tpu.memory_space<vmem>>, vector<1x32xf32>
    %c0_11 = arith.constant 0 : index
    %c0_12 = arith.constant 0 : index
    %15 = vector.load %arg6[%c0_11, %c0_12] : memref<1x32xf32, #tpu.memory_space<vmem>>, vector<1x32xf32>
    %cst_13 = arith.constant 2.000000e+01 : f32
    %16 = vector.broadcast %cst_13 : f32 to vector<1x32xf32>
    %17 = arith.cmpf ogt, %15, %16 : vector<1x32xf32>
    %cst_14 = arith.constant 2.000000e+01 : f32
    %18 = vector.broadcast %cst_14 : f32 to vector<1x32xf32>
    %19 = arith.minimumf %15, %18 : vector<1x32xf32>
    %20 = math.exp %19 : vector<1x32xf32>
    %21 = math.log1p %20 : vector<1x32xf32>
    %22 = arith.select %17, %15, %21 : vector<1x32xi1>, vector<1x32xf32>
    %c0_15 = arith.constant 0 : index
    %c0_16 = arith.constant 0 : index
    %23 = vector.load %arg7[%c0_15, %c0_16] : memref<1x32xf32, #tpu.memory_space<vmem>>, vector<1x32xf32>
    %24 = arith.mulf %22, %23 : vector<1x32xf32>
    %25 = arith.addf %14, %24 : vector<1x32xf32>
    %26 = vector.broadcast %25 : vector<1x32xf32> to vector<8x32xf32>
    %27 = arith.addf %13, %26 : vector<8x32xf32>
    %cst_17 = arith.constant 5.000000e-01 : f32
    %28 = vector.broadcast %cst_17 : f32 to vector<8x32xf32>
    %29 = arith.mulf %28, %27 : vector<8x32xf32>
    %30 = math.tanh %29 : vector<8x32xf32>
    %cst_18 = arith.constant 1.000000e+00 : f32
    %31 = vector.broadcast %cst_18 : f32 to vector<8x32xf32>
    %32 = arith.addf %30, %31 : vector<8x32xf32>
    %cst_19 = arith.constant 5.000000e-01 : f32
    %33 = vector.broadcast %cst_19 : f32 to vector<8x32xf32>
    %34 = arith.mulf %33, %32 : vector<8x32xf32>
    %c0_20 = arith.constant 0 : index
    %c0_21 = arith.constant 0 : index
    %35 = vector.load %arg8[%c0_20, %c0_21] : memref<32x32xf32, #tpu.memory_space<vmem>>, vector<32x32xf32>
    %c0_22 = arith.constant 0 : index
    %c0_23 = arith.constant 0 : index
    %36 = vector.load %arg9[%c0_22, %c0_23] : memref<32x32xf32, #tpu.memory_space<vmem>>, vector<32x32xf32>
    %cst_24 = arith.constant 2.000000e+01 : f32
    %37 = vector.broadcast %cst_24 : f32 to vector<32x32xf32>
    %38 = arith.cmpf ogt, %36, %37 : vector<32x32xf32>
    %cst_25 = arith.constant 2.000000e+01 : f32
    %39 = vector.broadcast %cst_25 : f32 to vector<32x32xf32>
    %40 = arith.minimumf %36, %39 : vector<32x32xf32>
    %41 = math.exp %40 : vector<32x32xf32>
    %42 = math.log1p %41 : vector<32x32xf32>
    %43 = arith.select %38, %36, %42 : vector<32x32xi1>, vector<32x32xf32>
    %c0_26 = arith.constant 0 : index
    %c0_27 = arith.constant 0 : index
    %44 = vector.load %arg10[%c0_26, %c0_27] : memref<32x32xf32, #tpu.memory_space<vmem>>, vector<32x32xf32>
    %45 = arith.mulf %43, %44 : vector<32x32xf32>
    %46 = arith.addf %35, %45 : vector<32x32xf32>
    %cst_28 = arith.constant dense<0.000000e+00> : vector<8x32xf32>
    %47 = tpu.matmul %34, %46, %cst_28 {dimension_numbers = #tpu.dot_dimension_numbers<[1], [1], [0], [0], [0, 0, 1, 0], [], []>} : vector<8x32xf32>, vector<32x32xf32>, vector<8x32xf32> -> vector<8x32xf32>
    %c0_29 = arith.constant 0 : index
    %c0_30 = arith.constant 0 : index
    %48 = vector.load %arg11[%c0_29, %c0_30] : memref<1x32xf32, #tpu.memory_space<vmem>>, vector<1x32xf32>
    %c0_31 = arith.constant 0 : index
    %c0_32 = arith.constant 0 : index
    %49 = vector.load %arg12[%c0_31, %c0_32] : memref<1x32xf32, #tpu.memory_space<vmem>>, vector<1x32xf32>
    %cst_33 = arith.constant 2.000000e+01 : f32
    %50 = vector.broadcast %cst_33 : f32 to vector<1x32xf32>
    %51 = arith.cmpf ogt, %49, %50 : vector<1x32xf32>
    %cst_34 = arith.constant 2.000000e+01 : f32
    %52 = vector.broadcast %cst_34 : f32 to vector<1x32xf32>
    %53 = arith.minimumf %49, %52 : vector<1x32xf32>
    %54 = math.exp %53 : vector<1x32xf32>
    %55 = math.log1p %54 : vector<1x32xf32>
    %56 = arith.select %51, %49, %55 : vector<1x32xi1>, vector<1x32xf32>
    %c0_35 = arith.constant 0 : index
    %c0_36 = arith.constant 0 : index
    %57 = vector.load %arg13[%c0_35, %c0_36] : memref<1x32xf32, #tpu.memory_space<vmem>>, vector<1x32xf32>
    %58 = arith.mulf %56, %57 : vector<1x32xf32>
    %59 = arith.addf %48, %58 : vector<1x32xf32>
    %60 = vector.broadcast %59 : vector<1x32xf32> to vector<8x32xf32>
    %61 = arith.addf %47, %60 : vector<8x32xf32>
    %cst_37 = arith.constant 5.000000e-01 : f32
    %62 = vector.broadcast %cst_37 : f32 to vector<8x32xf32>
    %63 = arith.mulf %62, %61 : vector<8x32xf32>
    %64 = math.tanh %63 : vector<8x32xf32>
    %cst_38 = arith.constant 1.000000e+00 : f32
    %65 = vector.broadcast %cst_38 : f32 to vector<8x32xf32>
    %66 = arith.addf %64, %65 : vector<8x32xf32>
    %cst_39 = arith.constant 5.000000e-01 : f32
    %67 = vector.broadcast %cst_39 : f32 to vector<8x32xf32>
    %68 = arith.mulf %67, %66 : vector<8x32xf32>
    %c0_40 = arith.constant 0 : index
    %c0_41 = arith.constant 0 : index
    %69 = vector.load %arg14[%c0_40, %c0_41] : memref<1x32xf32, #tpu.memory_space<vmem>>, vector<1x32xf32>
    %c0_42 = arith.constant 0 : index
    %c0_43 = arith.constant 0 : index
    %70 = vector.load %arg15[%c0_42, %c0_43] : memref<1x32xf32, #tpu.memory_space<vmem>>, vector<1x32xf32>
    %cst_44 = arith.constant 2.000000e+01 : f32
    %71 = vector.broadcast %cst_44 : f32 to vector<1x32xf32>
    %72 = arith.cmpf ogt, %70, %71 : vector<1x32xf32>
    %cst_45 = arith.constant 2.000000e+01 : f32
    %73 = vector.broadcast %cst_45 : f32 to vector<1x32xf32>
    %74 = arith.minimumf %70, %73 : vector<1x32xf32>
    %75 = math.exp %74 : vector<1x32xf32>
    %76 = math.log1p %75 : vector<1x32xf32>
    %77 = arith.select %72, %70, %76 : vector<1x32xi1>, vector<1x32xf32>
    %c0_46 = arith.constant 0 : index
    %c0_47 = arith.constant 0 : index
    %78 = vector.load %arg16[%c0_46, %c0_47] : memref<1x32xf32, #tpu.memory_space<vmem>>, vector<1x32xf32>
    %79 = arith.mulf %77, %78 : vector<1x32xf32>
    %80 = arith.addf %69, %79 : vector<1x32xf32>
    %cst_48 = arith.constant dense<0.000000e+00> : vector<1x8xf32>
    %81 = tpu.matmul %80, %68, %cst_48 {dimension_numbers = #tpu.dot_dimension_numbers<[1], [1], [0], [0], [0, 0, 1, 0], [], []>} : vector<1x32xf32>, vector<8x32xf32>, vector<1x8xf32> -> vector<1x8xf32>
    %c0_49 = arith.constant 0 : index
    %c0_50 = arith.constant 0 : index
    %82 = vector.load %arg17[%c0_49, %c0_50] : memref<1x1xf32, #tpu.memory_space<vmem>>, vector<1x1xf32>
    %c0_51 = arith.constant 0 : index
    %c0_52 = arith.constant 0 : index
    %83 = vector.load %arg18[%c0_51, %c0_52] : memref<1x1xf32, #tpu.memory_space<vmem>>, vector<1x1xf32>
    %cst_53 = arith.constant 2.000000e+01 : f32
    %84 = vector.broadcast %cst_53 : f32 to vector<1x1xf32>
    %85 = arith.cmpf ogt, %83, %84 : vector<1x1xf32>
    %cst_54 = arith.constant 2.000000e+01 : f32
    %86 = vector.broadcast %cst_54 : f32 to vector<1x1xf32>
    %87 = arith.minimumf %83, %86 : vector<1x1xf32>
    %88 = math.exp %87 : vector<1x1xf32>
    %89 = math.log1p %88 : vector<1x1xf32>
    %90 = arith.select %85, %83, %89 : vector<1x1xi1>, vector<1x1xf32>
    %c0_55 = arith.constant 0 : index
    %c0_56 = arith.constant 0 : index
    %91 = vector.load %arg19[%c0_55, %c0_56] : memref<1x1xf32, #tpu.memory_space<vmem>>, vector<1x1xf32>
    %92 = arith.mulf %90, %91 : vector<1x1xf32>
    %93 = arith.addf %82, %92 : vector<1x1xf32>
    %94 = vector.broadcast %93 : vector<1x1xf32> to vector<1x8xf32>
    %95 = arith.addf %81, %94 : vector<1x8xf32>
    %c0_57 = arith.constant 0 : index
    %c0_58 = arith.constant 0 : index
    %96 = vector.load %arg20[%c0_57, %c0_58] : memref<1x8xf32, #tpu.memory_space<vmem>>, vector<1x8xf32>
    tpu.vector_store %arg20[%c0_57, %c0_58], %95 {strides = array<i32>} : memref<1x8xf32, #tpu.memory_space<vmem>>, vector<1x8xf32>,
    return
  }
  func.func @transform_0(%arg0: i32) -> (i32, i32) {
    %c0_i32 = arith.constant 0 : i32
    %c0_i32_0 = arith.constant 0 : i32
    return %arg0, %c0_i32 : i32, i32
  }
  func.func @transform_1(%arg0: i32) -> (i32, i32) {
    %c0_i32 = arith.constant 0 : i32
    %c0_i32_0 = arith.constant 0 : i32
    %c0_i32_1 = arith.constant 0 : i32
    return %c0_i32, %c0_i32_0 : i32, i32
  }
  func.func @transform_2(%arg0: i32) -> (i32, i32) {
    %c0_i32 = arith.constant 0 : i32
    %c0_i32_0 = arith.constant 0 : i32
    %c0_i32_1 = arith.constant 0 : i32
    return %c0_i32, %c0_i32_0 : i32, i32
  }
  func.func @transform_3(%arg0: i32) -> (i32, i32) {
    %c0_i32 = arith.constant 0 : i32
    %c0_i32_0 = arith.constant 0 : i32
    %c0_i32_1 = arith.constant 0 : i32
    return %c0_i32, %c0_i32_0 : i32, i32
  }
  func.func @transform_4(%arg0: i32) -> (i32, i32) {
    %c0_i32 = arith.constant 0 : i32
    %c0_i32_0 = arith.constant 0 : i32
    %c0_i32_1 = arith.constant 0 : i32
    return %c0_i32, %c0_i32_0 : i32, i32
  }
  func.func @transform_5(%arg0: i32) -> (i32, i32) {
    %c0_i32 = arith.constant 0 : i32
    %c0_i32_0 = arith.constant 0 : i32
    %c0_i32_1 = arith.constant 0 : i32
    return %c0_i32, %c0_i32_0 : i32, i32
  }
  func.func @transform_6(%arg0: i32) -> (i32, i32) {
    %c0_i32 = arith.constant 0 : i32
    %c0_i32_0 = arith.constant 0 : i32
    %c0_i32_1 = arith.constant 0 : i32
    return %c0_i32, %c0_i32_0 : i32, i32
  }
  func.func @transform_7(%arg0: i32) -> (i32, i32) {
    %c0_i32 = arith.constant 0 : i32
    %c0_i32_0 = arith.constant 0 : i32
    %c0_i32_1 = arith.constant 0 : i32
    return %c0_i32, %c0_i32_0 : i32, i32
  }
  func.func @transform_8(%arg0: i32) -> (i32, i32) {
    %c0_i32 = arith.constant 0 : i32
    %c0_i32_0 = arith.constant 0 : i32
    %c0_i32_1 = arith.constant 0 : i32
    return %c0_i32, %c0_i32_0 : i32, i32
  }
  func.func @transform_9(%arg0: i32) -> (i32, i32) {
    %c0_i32 = arith.constant 0 : i32
    %c0_i32_0 = arith.constant 0 : i32
    %c0_i32_1 = arith.constant 0 : i32
    return %c0_i32, %c0_i32_0 : i32, i32
  }
  func.func @transform_10(%arg0: i32) -> (i32, i32) {
    %c0_i32 = arith.constant 0 : i32
    %c0_i32_0 = arith.constant 0 : i32
    %c0_i32_1 = arith.constant 0 : i32
    return %c0_i32, %c0_i32_0 : i32, i32
  }
  func.func @transform_11(%arg0: i32) -> (i32, i32) {
    %c0_i32 = arith.constant 0 : i32
    %c0_i32_0 = arith.constant 0 : i32
    %c0_i32_1 = arith.constant 0 : i32
    return %c0_i32, %c0_i32_0 : i32, i32
  }
  func.func @transform_12(%arg0: i32) -> (i32, i32) {
    %c0_i32 = arith.constant 0 : i32
    %c0_i32_0 = arith.constant 0 : i32
    %c0_i32_1 = arith.constant 0 : i32
    return %c0_i32, %c0_i32_0 : i32, i32
  }
  func.func @transform_13(%arg0: i32) -> (i32, i32) {
    %c0_i32 = arith.constant 0 : i32
    %c0_i32_0 = arith.constant 0 : i32
    %c0_i32_1 = arith.constant 0 : i32
    return %c0_i32, %c0_i32_0 : i32, i32
  }
  func.func @transform_14(%arg0: i32) -> (i32, i32) {
    %c0_i32 = arith.constant 0 : i32
    %c0_i32_0 = arith.constant 0 : i32
    %c0_i32_1 = arith.constant 0 : i32
    return %c0_i32, %c0_i32_0 : i32, i32
  }
  func.func @transform_15(%arg0: i32) -> (i32, i32) {
    %c0_i32 = arith.constant 0 : i32
    %c0_i32_0 = arith.constant 0 : i32
    %c0_i32_1 = arith.constant 0 : i32
    return %c0_i32, %c0_i32_0 : i32, i32
  }
  func.func @transform_16(%arg0: i32) -> (i32, i32) {
    %c0_i32 = arith.constant 0 : i32
    %c0_i32_0 = arith.constant 0 : i32
    %c0_i32_1 = arith.constant 0 : i32
    return %c0_i32, %c0_i32_0 : i32, i32
  }
  func.func @transform_17(%arg0: i32) -> (i32, i32) {
    %c0_i32 = arith.constant 0 : i32
    %c0_i32_0 = arith.constant 0 : i32
    %c0_i32_1 = arith.constant 0 : i32
    return %c0_i32, %c0_i32_0 : i32, i32
  }
  func.func @transform_18(%arg0: i32) -> (i32, i32) {
    %c0_i32 = arith.constant 0 : i32
    %c0_i32_0 = arith.constant 0 : i32
    %c0_i32_1 = arith.constant 0 : i32
    return %c0_i32, %c0_i32_0 : i32, i32
  }
  func.func @transform_19(%arg0: i32) -> (i32, i32) {
    %c0_i32 = arith.constant 0 : i32
    %c0_i32_0 = arith.constant 0 : i32
    return %c0_i32, %arg0 : i32, i32
  }
}

</mosaic_0001>

<llo_original>
// kernel: tpu_custom_call.1
$region0: #{tpu_custom_call.1}
  #allocation0 [shape = 'u32[]', space=smem, size = 0x4, offset = 0x4, fixed_abs, tag = 'smem constant byte address 0x4 - core index']
  #allocation1 [shape = 'u32[144,128]{1,0:T(1,128)}', space=vmem, size = 0x12000, scoped, tag = 'internal scratch']
  #allocation2 [shape = 'f32[1,1]{1,0:T(1,128)S(1)}', space=vmem, size = 0x200, scoped, tag = 'scoped memory for tpu_custom_call.1']
  #allocation3 [shape = 'f32[1,1]{1,0:T(1,128)S(1)}', space=vmem, size = 0x200, scoped, tag = 'scoped memory for tpu_custom_call.1']
  #allocation4 [shape = 'f32[1,1]{1,0:T(1,128)S(1)}', space=vmem, size = 0x200, scoped, tag = 'scoped memory for tpu_custom_call.1']
  %s0 = inlined_call_operand.vmem [shape: f32[8,16], index: 0, kind: input, shape index: {}]
  %s1 = inlined_call_operand.vmem [shape: f32[32,16], index: 1, kind: input, shape index: {}]
  %s2 = inlined_call_operand.vmem [shape: f32[32,16], index: 2, kind: input, shape index: {}]
  %s3 = inlined_call_operand.vmem [shape: f32[32,16], index: 3, kind: input, shape index: {}]
  %s4 = inlined_call_operand.vmem [shape: f32[1,32], index: 4, kind: input, shape index: {}]
  %s5 = inlined_call_operand.vmem [shape: f32[1,32], index: 5, kind: input, shape index: {}]
  %s6 = inlined_call_operand.vmem [shape: f32[1,32], index: 6, kind: input, shape index: {}]
  %s7 = inlined_call_operand.vmem [shape: f32[32,32], index: 7, kind: input, shape index: {}]
  %s8 = inlined_call_operand.vmem [shape: f32[32,32], index: 8, kind: input, shape index: {}]
  %s9 = inlined_call_operand.vmem [shape: f32[32,32], index: 9, kind: input, shape index: {}]
  %s10 = inlined_call_operand.vmem [shape: f32[1,32], index: 10, kind: input, shape index: {}]
  %s11 = inlined_call_operand.vmem [shape: f32[1,32], index: 11, kind: input, shape index: {}]
  %s12 = inlined_call_operand.vmem [shape: f32[1,32], index: 12, kind: input, shape index: {}]
  %s13 = inlined_call_operand.vmem [shape: f32[1,32], index: 13, kind: input, shape index: {}]
  %s14 = inlined_call_operand.vmem [shape: f32[1,32], index: 14, kind: input, shape index: {}]
  %s15 = inlined_call_operand.vmem [shape: f32[1,32], index: 15, kind: input, shape index: {}]
  %s16 = inlined_call_operand.<no memory space> [shape: f32[1,1], index: 16, kind: input, shape index: {}]
  %s17 = inlined_call_operand.<no memory space> [shape: f32[1,1], index: 17, kind: input, shape index: {}]
  %s18 = inlined_call_operand.<no memory space> [shape: f32[1,1], index: 18, kind: input, shape index: {}]
  %s19 = inlined_call_operand.hbm [shape: f32[1,8], index: 19, kind: output, shape index: {}]
  %s20 = sld [smem:[#allocation0]]
  $region86: #{tpu_custom_call.1} parent=0
    _
  %s22 = ssub.s32 1, %s20
  %s23 = scalar_select 0, %s22, %s20
  %v24 = vstv %s16
  %25 = vst [vmem:[#allocation2] sm:$0x1] %v24
  %v26 = vstv %s17
  %27 = vst [vmem:[#allocation3] sm:$0x1] %v26
  %v28 = vstv %s18
  %29 = vst [vmem:[#allocation4] sm:$0x1] %v28
  $region1: #{tpu_custom_call.1} parent=0
    #allocation5 [shape = 'u8[512]{0}', space=vmem, size = 0x400, scoped, tag = 'output window, operand 0, single buffered']
    #allocation6 [shape = 's32[1]{0}', space=sflag, size = 0x4, scoped, tag = 'scoped memory for tpu_custom_call.1']
    %30 = vsyncpa [#allocation6], 0
    // Predicated region
    $region2: #{tpu_custom_call.1} parent=1 // pred_check
      _
    $region3: #{tpu_custom_call.1} parent=1 // pred_check_branch
      %32 = sbr.rel (0) target = $region5
    $region4: #{tpu_custom_call.1} parent=1 // pred_region
      _
    $region5: #{tpu_custom_call.1} parent=1 // pred_fallthru
      _
    // Predicated region
    $region6: #{tpu_custom_call.1} parent=1 // pred_check
      _
    $region7: #{tpu_custom_call.1} parent=1 // pred_check_branch
      %34 = sbr.rel (0) target = $region9
    $region8: #{tpu_custom_call.1} parent=1 // pred_region
      _
    $region9: #{tpu_custom_call.1} parent=1 // pred_fallthru
      _
    // Predicated region
    $region10: #{tpu_custom_call.1} parent=1 // pred_check
      _
    $region11: #{tpu_custom_call.1} parent=1 // pred_check_branch
      %36 = sbr.rel (0) target = $region13
    $region12: #{tpu_custom_call.1} parent=1 // pred_region
      _
    $region13: #{tpu_custom_call.1} parent=1 // pred_fallthru
      _
    // Predicated region
    $region14: #{tpu_custom_call.1} parent=1 // pred_check
      _
    $region15: #{tpu_custom_call.1} parent=1 // pred_check_branch
      %38 = sbr.rel (0) target = $region17
    $region16: #{tpu_custom_call.1} parent=1 // pred_region
      _
    $region17: #{tpu_custom_call.1} parent=1 // pred_fallthru
      _
    // Predicated region
    $region18: #{tpu_custom_call.1} parent=1 // pred_check
      _
    $region19: #{tpu_custom_call.1} parent=1 // pred_check_branch
      %40 = sbr.rel (0) target = $region21
    $region20: #{tpu_custom_call.1} parent=1 // pred_region
      _
    $region21: #{tpu_custom_call.1} parent=1 // pred_fallthru
      _
    // Predicated region
    $region22: #{tpu_custom_call.1} parent=1 // pred_check
      _
    $region23: #{tpu_custom_call.1} parent=1 // pred_check_branch
      %42 = sbr.rel (0) target = $region25
    $region24: #{tpu_custom_call.1} parent=1 // pred_region
      _
    $region25: #{tpu_custom_call.1} parent=1 // pred_fallthru
      _
    // Predicated region
    $region26: #{tpu_custom_call.1} parent=1 // pred_check
      _
    $region27: #{tpu_custom_call.1} parent=1 // pred_check_branch
      %44 = sbr.rel (0) target = $region29
    $region28: #{tpu_custom_call.1} parent=1 // pred_region
      _
    $region29: #{tpu_custom_call.1} parent=1 // pred_fallthru
      _
    // Predicated region
    $region30: #{tpu_custom_call.1} parent=1 // pred_check
      _
    $region31: #{tpu_custom_call.1} parent=1 // pred_check_branch
      %46 = sbr.rel (0) target = $region33
    $region32: #{tpu_custom_call.1} parent=1 // pred_region
      _
    $region33: #{tpu_custom_call.1} parent=1 // pred_fallthru
      _
    // Predicated region
    $region34: #{tpu_custom_call.1} parent=1 // pred_check
      _
    $region35: #{tpu_custom_call.1} parent=1 // pred_check_branch
      %48 = sbr.rel (0) target = $region37
    $region36: #{tpu_custom_call.1} parent=1 // pred_region
      _
    $region37: #{tpu_custom_call.1} parent=1 // pred_fallthru
      _
    // Predicated region
    $region38: #{tpu_custom_call.1} parent=1 // pred_check
      _
    $region39: #{tpu_custom_call.1} parent=1 // pred_check_branch
      %50 = sbr.rel (0) target = $region41
    $region40: #{tpu_custom_call.1} parent=1 // pred_region
      _
    $region41: #{tpu_custom_call.1} parent=1 // pred_fallthru
      _
    // Predicated region
    $region42: #{tpu_custom_call.1} parent=1 // pred_check
      _
    $region43: #{tpu_custom_call.1} parent=1 // pred_check_branch
      %52 = sbr.rel (0) target = $region45
    $region44: #{tpu_custom_call.1} parent=1 // pred_region
      _
    $region45: #{tpu_custom_call.1} parent=1 // pred_fallthru
      _
    // Predicated region
    $region46: #{tpu_custom_call.1} parent=1 // pred_check
      _
    $region47: #{tpu_custom_call.1} parent=1 // pred_check_branch
      %54 = sbr.rel (0) target = $region49
    $region48: #{tpu_custom_call.1} parent=1 // pred_region
      _
    $region49: #{tpu_custom_call.1} parent=1 // pred_fallthru
      _
    // Predicated region
    $region50: #{tpu_custom_call.1} parent=1 // pred_check
      _
    $region51: #{tpu_custom_call.1} parent=1 // pred_check_branch
      %56 = sbr.rel (0) target = $region53
    $region52: #{tpu_custom_call.1} parent=1 // pred_region
      _
    $region53: #{tpu_custom_call.1} parent=1 // pred_fallthru
      _
    // Predicated region
    $region54: #{tpu_custom_call.1} parent=1 // pred_check
      _
    $region55: #{tpu_custom_call.1} parent=1 // pred_check_branch
      %58 = sbr.rel (0) target = $region57
    $region56: #{tpu_custom_call.1} parent=1 // pred_region
      _
    $region57: #{tpu_custom_call.1} parent=1 // pred_fallthru
      _
    // Predicated region
    $region58: #{tpu_custom_call.1} parent=1 // pred_check
      _
    $region59: #{tpu_custom_call.1} parent=1 // pred_check_branch
      %60 = sbr.rel (0) target = $region61
    $region60: #{tpu_custom_call.1} parent=1 // pred_region
      _
    $region61: #{tpu_custom_call.1} parent=1 // pred_fallthru
      _
    // Predicated region
    $region62: #{tpu_custom_call.1} parent=1 // pred_check
      _
    $region63: #{tpu_custom_call.1} parent=1 // pred_check_branch
      %62 = sbr.rel (0) target = $region65
    $region64: #{tpu_custom_call.1} parent=1 // pred_region
      _
    $region65: #{tpu_custom_call.1} parent=1 // pred_fallthru
      _
    // Predicated region
    $region66: #{tpu_custom_call.1} parent=1 // pred_check
      _
    $region67: #{tpu_custom_call.1} parent=1 // pred_check_branch
      %64 = sbr.rel (0) target = $region69
    $region68: #{tpu_custom_call.1} parent=1 // pred_region
      _
    $region69: #{tpu_custom_call.1} parent=1 // pred_fallthru
      _
    // Predicated region
    $region70: #{tpu_custom_call.1} parent=1 // pred_check
      _
    $region71: #{tpu_custom_call.1} parent=1 // pred_check_branch
      %66 = sbr.rel (0) target = $region73
    $region72: #{tpu_custom_call.1} parent=1 // pred_region
      _
    $region73: #{tpu_custom_call.1} parent=1 // pred_fallthru
      _
    // Predicated region
    $region74: #{tpu_custom_call.1} parent=1 // pred_check
      _
    $region75: #{tpu_custom_call.1} parent=1 // pred_check_branch
      %68 = sbr.rel (0) target = $region77
    $region76: #{tpu_custom_call.1} parent=1 // pred_region
      _
    $region77: #{tpu_custom_call.1} parent=1 // pred_fallthru
      _
    %v69 = vld [vmem:[%s0] sm:$0xff]
    %v70 = vld [vmem:[%s1] sm:$0xff]
    %v71 = vld [vmem:[%s1 + $0x8] sm:$0xff]
    %v72 = vld [vmem:[%s1 + $0x10] sm:$0xff]
    %v73 = vld [vmem:[%s1 + $0x18] sm:$0xff]
    %v74 = vld [vmem:[%s2] sm:$0xff]
    %v75 = vld [vmem:[%s2 + $0x8] sm:$0xff]
    %v76 = vld [vmem:[%s2 + $0x10] sm:$0xff]
    %v77 = vld [vmem:[%s2 + $0x18] sm:$0xff]
    %vm78 = vcmp.gt.f32.partialorder %v74, 20.0
    %vm79 = vcmp.gt.f32.partialorder %v75, 20.0
    %vm80 = vcmp.gt.f32.partialorder %v76, 20.0
    %vm81 = vcmp.gt.f32.partialorder %v77, 20.0
    %v82 = vmin.f32 %v74, 20.0
    %v83 = vmin.f32 %v75, 20.0
    %v84 = vmin.f32 %v76, 20.0
    %v85 = vmin.f32 %v77, 20.0
    %v86 = vmul.f32 %v82, 1.442695
    %v87 = vpow.pop %v86
    %v88 = vmul.f32 %v83, 1.442695
    %v89 = vpow.pop %v88
    %v90 = vmul.f32 %v84, 1.442695
    %v91 = vpow.pop %v90
    %v92 = vmul.f32 %v85, 1.442695
    %v93 = vpow.pop %v92
    %v94 = vadd.f32 %v87, 1.0
    %v95 = vlog2.pop %v94
    %v96 = vmul.f32 %v95, 0.6931472
    %v97 = vmul.f32 -0.5, %v87
    %v98 = vadd.f32 %v97, 1.0
    %v99 = vmul.f32 %v98, %v87
    %v100 = vand.u32 2147483647, %v87
    %vm101 = vcmp.lt.f32.partialorder %v100, 0.0004427343
    %v102 = vsel %vm101, %v99, %v96
    %v103 = vadd.f32 %v89, 1.0
    %v104 = vlog2.pop %v103
    %v105 = vmul.f32 %v104, 0.6931472
    %v106 = vmul.f32 -0.5, %v89
    %v107 = vadd.f32 %v106, 1.0
    %v108 = vmul.f32 %v107, %v89
    %v109 = vand.u32 2147483647, %v89
    %vm110 = vcmp.lt.f32.partialorder %v109, 0.0004427343
    %v111 = vsel %vm110, %v108, %v105
    %v112 = vadd.f32 %v91, 1.0
    %v113 = vlog2.pop %v112
    %v114 = vmul.f32 %v113, 0.6931472
    %v115 = vmul.f32 -0.5, %v91
    %v116 = vadd.f32 %v115, 1.0
    %v117 = vmul.f32 %v116, %v91
    %v118 = vand.u32 2147483647, %v91
    %vm119 = vcmp.lt.f32.partialorder %v118, 0.0004427343
    %v120 = vsel %vm119, %v117, %v114
    %v121 = vadd.f32 %v93, 1.0
    %v122 = vlog2.pop %v121
    %v123 = vmul.f32 %v122, 0.6931472
    %v124 = vmul.f32 -0.5, %v93
    %v125 = vadd.f32 %v124, 1.0
    %v126 = vmul.f32 %v125, %v93
    %v127 = vand.u32 2147483647, %v93
    %vm128 = vcmp.lt.f32.partialorder %v127, 0.0004427343
    %v129 = vsel %vm128, %v126, %v123
    %v130 = vsel %vm78, %v74, %v102
    %v131 = vsel %vm79, %v75, %v111
    %v132 = vsel %vm80, %v76, %v120
    %v133 = vsel %vm81, %v77, %v129
    %v134 = vld [vmem:[%s3] sm:$0xff]
    %v135 = vld [vmem:[%s3 + $0x8] sm:$0xff]
    %v136 = vld [vmem:[%s3 + $0x10] sm:$0xff]
    %v137 = vld [vmem:[%s3 + $0x18] sm:$0xff]
    %v138 = vmul.f32 %v130, %v134
    %v139 = vmul.f32 %v131, %v135
    %v140 = vmul.f32 %v132, %v136
    %v141 = vmul.f32 %v133, %v137
    %v142 = vadd.f32 %v70, %v138
    %v143 = vadd.f32 %v71, %v139
    %v144 = vadd.f32 %v72, %v140
    %v145 = vadd.f32 %v73, %v141
    %v146 = vld [vmem:[%s4] sm:$0x1]
    %v147 = vld [vmem:[%s5] sm:$0x1]
    %vm148 = vcmp.gt.f32.partialorder %v147, 20.0
    %v149 = vmin.f32 %v147, 20.0
    %v150 = vmul.f32 %v149, 1.442695
    %v151 = vpow.pop %v150
    %v152 = vadd.f32 %v151, 1.0
    %v153 = vlog2.pop %v152
    %v154 = vmul.f32 %v153, 0.6931472
    %v155 = vmul.f32 -0.5, %v151
    %v156 = vadd.f32 %v155, 1.0
    %v157 = vmul.f32 %v156, %v151
    %v158 = vand.u32 2147483647, %v151
    %vm159 = vcmp.lt.f32.partialorder %v158, 0.0004427343
    %v160 = vsel %vm159, %v157, %v154
    %v161 = vsel %vm148, %v147, %v160
    %v162 = vld [vmem:[%s6] sm:$0x1]
    %v163 = vmul.f32 %v161, %v162
    %v164 = vadd.f32 %v146, %v163
    %v166 = vlaneseq
    %v167 = vshrl.u32 %v166, 7
    %v168 = vsub.s32 0, %v167
    %v169 = vrot.slane %v164, %v168
    %vm171 = vcmask 130048
    %v173 = vsel %vm171, %v69, 0
    %v176 = vsel %vm171, %v142, 0
    %v179 = vsel %vm171, %v143, 0
    %v182 = vsel %vm171, %v144, 0
    %v185 = vsel %vm171, %v145, 0
    %187 = vmatprep.subr.mxu0 0.0
    %188 = vmatpush1.xpose.msra.mxu0 0.0
    %189 = vmatprep.subr.mxu0 0.0
    %190 = vmatpush1.xpose.msra.mxu0 0.0
    %191 = vmatprep.subr.mxu0 0.0
    %192 = vmatpush1.xpose.msra.mxu0 0.0
    %193 = vmatprep.subr.mxu0 0.0
    %194 = vmatpush1.xpose.msra.mxu0 0.0
    %195 = vmatprep.subr.mxu0 0.0
    %196 = vmatpush1.xpose.msra.mxu0 0.0
    %197 = vmatprep.subr.mxu0 0.0
    %198 = vmatpush1.xpose.msra.mxu0 0.0
    %199 = vmatprep.subr.mxu0 0.0
    %200 = vmatpush1.xpose.msra.mxu0 0.0
    %201 = vmatprep.subr.mxu0 0.0
    %202 = vmatpush1.xpose.msra.mxu0 0.0
    %203 = vmatprep.subr.mxu0 0.0
    %204 = vmatpush1.xpose.msra.mxu0 0.0
    %205 = vmatprep.subr.mxu0 0.0
    %206 = vmatpush1.xpose.msra.mxu0 0.0
    %207 = vmatprep.subr.mxu0 0.0
    %208 = vmatpush1.xpose.msra.mxu0 0.0
    %209 = vmatprep.subr.mxu0 0.0
    %210 = vmatpush1.xpose.msra.mxu0 0.0
    %211 = vmatprep.subr.mxu0 0.0
    %212 = vmatpush1.xpose.msra.mxu0 %v185
    %213 = vmatprep.subr.mxu0 0.0
    %214 = vmatpush1.xpose.msra.mxu0 %v182
    %215 = vmatprep.subr.mxu0 0.0
    %216 = vmatpush1.xpose.msra.mxu0 %v179
    %217 = vmatprep.subr.mxu0 0.0
    %218 = vmatpush1.xpose.msra.mxu0 %v176
    %219 = vmatprep.subr.mxu0 0.0
    %220 = vmatpush2.xpose.msra.mxu0 0.0
    %221 = vmatprep.subr.mxu0 0.0
    %222 = vmatpush2.xpose.msra.mxu0 0.0
    %223 = vmatprep.subr.mxu0 0.0
    %224 = vmatpush2.xpose.msra.mxu0 0.0
    %225 = vmatprep.subr.mxu0 0.0
    %226 = vmatpush2.xpose.msra.mxu0 0.0
    %227 = vmatprep.subr.mxu0 0.0
    %228 = vmatpush2.xpose.msra.mxu0 0.0
    %229 = vmatprep.subr.mxu0 0.0
    %230 = vmatpush2.xpose.msra.mxu0 0.0
    %231 = vmatprep.subr.mxu0 0.0
    %232 = vmatpush2.xpose.msra.mxu0 0.0
    %233 = vmatprep.subr.mxu0 0.0
    %234 = vmatpush2.xpose.msra.mxu0 0.0
    %235 = vmatprep.subr.mxu0 0.0
    %236 = vmatpush2.xpose.msra.mxu0 0.0
    %237 = vmatprep.subr.mxu0 0.0
    %238 = vmatpush2.xpose.msra.mxu0 0.0
    %239 = vmatprep.subr.mxu0 0.0
    %240 = vmatpush2.xpose.msra.mxu0 0.0
    %241 = vmatprep.subr.mxu0 0.0
    %242 = vmatpush2.xpose.msra.mxu0 0.0
    %243 = vmatprep.subr.mxu0 0.0
    %244 = vmatpush2.xpose.msra.mxu0 0.0
    %245 = vmatprep.subr.mxu0 0.0
    %246 = vmatpush2.xpose.msra.mxu0 0.0
    %247 = vmatprep.subr.mxu0 0.0
    %248 = vmatpush2.xpose.msra.mxu0 0.0
    %249 = vmatprep.subr.mxu0 0.0
    %250 = vmatpush2.xpose.msra.mxu0 0.0
    %251 = vmatprep.mubr.f32.mxu0 0.0
    %252 = vmatmul.mubr.f32.gmra.mxu0 %v173
    %v253 = vpop.f32.mrf.mxu0
    %v254 = vadd.f32 %v169, %v253
    %v255 = vpop.f32.mrf.mxu0
    %256 = vdwg.mxu0
    %v257 = vmul.f32 %v254, 0.5
    %v258 = vtanh.pop %v257
    %v259 = vadd.f32 %v258, 1.0
    %v260 = vmul.f32 %v259, 0.5
    %v261 = vld [vmem:[%s7] sm:$0xff]
    %v262 = vld [vmem:[%s7 + $0x8] sm:$0xff]
    %v263 = vld [vmem:[%s7 + $0x10] sm:$0xff]
    %v264 = vld [vmem:[%s7 + $0x18] sm:$0xff]
    %v265 = vld [vmem:[%s8] sm:$0xff]
    %v266 = vld [vmem:[%s8 + $0x8] sm:$0xff]
    %v267 = vld [vmem:[%s8 + $0x10] sm:$0xff]
    %v268 = vld [vmem:[%s8 + $0x18] sm:$0xff]
    %vm269 = vcmp.gt.f32.partialorder %v265, 20.0
    %vm270 = vcmp.gt.f32.partialorder %v266, 20.0
    %vm271 = vcmp.gt.f32.partialorder %v267, 20.0
    %vm272 = vcmp.gt.f32.partialorder %v268, 20.0
    %v273 = vmin.f32 %v265, 20.0
    %v274 = vmin.f32 %v266, 20.0
    %v275 = vmin.f32 %v267, 20.0
    %v276 = vmin.f32 %v268, 20.0
    %v277 = vmul.f32 %v273, 1.442695
    %v278 = vpow.pop %v277
    %v279 = vmul.f32 %v274, 1.442695
    %v280 = vpow.pop %v279
    %v281 = vmul.f32 %v275, 1.442695
    %v282 = vpow.pop %v281
    %v283 = vmul.f32 %v276, 1.442695
    %v284 = vpow.pop %v283
    %v285 = vadd.f32 %v278, 1.0
    %v286 = vlog2.pop %v285
    %v287 = vmul.f32 %v286, 0.6931472
    %v288 = vmul.f32 -0.5, %v278
    %v289 = vadd.f32 %v288, 1.0
    %v290 = vmul.f32 %v289, %v278
    %v291 = vand.u32 2147483647, %v278
    %vm292 = vcmp.lt.f32.partialorder %v291, 0.0004427343
    %v293 = vsel %vm292, %v290, %v287
    %v294 = vadd.f32 %v280, 1.0
    %v295 = vlog2.pop %v294
    %v296 = vmul.f32 %v295, 0.6931472
    %v297 = vmul.f32 -0.5, %v280
    %v298 = vadd.f32 %v297, 1.0
    %v299 = vmul.f32 %v298, %v280
    %v300 = vand.u32 2147483647, %v280
    %vm301 = vcmp.lt.f32.partialorder %v300, 0.0004427343
    %v302 = vsel %vm301, %v299, %v296
    %v303 = vadd.f32 %v282, 1.0
    %v304 = vlog2.pop %v303
    %v305 = vmul.f32 %v304, 0.6931472
    %v306 = vmul.f32 -0.5, %v282
    %v307 = vadd.f32 %v306, 1.0
    %v308 = vmul.f32 %v307, %v282
    %v309 = vand.u32 2147483647, %v282
    %vm310 = vcmp.lt.f32.partialorder %v309, 0.0004427343
    %v311 = vsel %vm310, %v308, %v305
    %v312 = vadd.f32 %v284, 1.0
    %v313 = vlog2.pop %v312
    %v314 = vmul.f32 %v313, 0.6931472
    %v315 = vmul.f32 -0.5, %v284
    %v316 = vadd.f32 %v315, 1.0
    %v317 = vmul.f32 %v316, %v284
    %v318 = vand.u32 2147483647, %v284
    %vm319 = vcmp.lt.f32.partialorder %v318, 0.0004427343
    %v320 = vsel %vm319, %v317, %v314
    %v321 = vsel %vm269, %v265, %v293
    %v322 = vsel %vm270, %v266, %v302
    %v323 = vsel %vm271, %v267, %v311
    %v324 = vsel %vm272, %v268, %v320
    %v325 = vld [vmem:[%s9] sm:$0xff]
    %v326 = vld [vmem:[%s9 + $0x8] sm:$0xff]
    %v327 = vld [vmem:[%s9 + $0x10] sm:$0xff]
    %v328 = vld [vmem:[%s9 + $0x18] sm:$0xff]
    %v329 = vmul.f32 %v321, %v325
    %v330 = vmul.f32 %v322, %v326
    %v331 = vmul.f32 %v323, %v327
    %v332 = vmul.f32 %v324, %v328
    %v333 = vadd.f32 %v261, %v329
    %v334 = vadd.f32 %v262, %v330
    %v335 = vadd.f32 %v263, %v331
    %v336 = vadd.f32 %v264, %v332
    %v337 = vld [vmem:[%s10] sm:$0x1]
    %v338 = vld [vmem:[%s11] sm:$0x1]
    %vm339 = vcmp.gt.f32.partialorder %v338, 20.0
    %v340 = vmin.f32 %v338, 20.0
    %v341 = vmul.f32 %v340, 1.442695
    %v342 = vpow.pop %v341
    %v343 = vadd.f32 %v342, 1.0
    %v344 = vlog2.pop %v343
    %v345 = vmul.f32 %v344, 0.6931472
    %v346 = vmul.f32 -0.5, %v342
    %v347 = vadd.f32 %v346, 1.0
    %v348 = vmul.f32 %v347, %v342
    %v349 = vand.u32 2147483647, %v342
    %vm350 = vcmp.lt.f32.partialorder %v349, 0.0004427343
    %v351 = vsel %vm350, %v348, %v345
    %v352 = vsel %vm339, %v338, %v351
    %v353 = vld [vmem:[%s12] sm:$0x1]
    %v354 = vmul.f32 %v352, %v353
    %v355 = vadd.f32 %v337, %v354
    %v357 = vlaneseq
    %v358 = vshrl.u32 %v357, 7
    %v359 = vsub.s32 0, %v358
    %v360 = vrot.slane %v355, %v359
    %vm362 = vcmask 261120
    %v364 = vsel %vm362, %v260, 0
    %v367 = vsel %vm362, %v333, 0
    %v370 = vsel %vm362, %v334, 0
    %v373 = vsel %vm362, %v335, 0
    %v376 = vsel %vm362, %v336, 0
    %378 = vmatprep.subr.mxu0 0.0
    %379 = vmatpush1.xpose.msra.mxu0 0.0
    %380 = vmatprep.subr.mxu0 0.0
    %381 = vmatpush1.xpose.msra.mxu0 0.0
    %382 = vmatprep.subr.mxu0 0.0
    %383 = vmatpush1.xpose.msra.mxu0 0.0
    %384 = vmatprep.subr.mxu0 0.0
    %385 = vmatpush1.xpose.msra.mxu0 0.0
    %386 = vmatprep.subr.mxu0 0.0
    %387 = vmatpush1.xpose.msra.mxu0 0.0
    %388 = vmatprep.subr.mxu0 0.0
    %389 = vmatpush1.xpose.msra.mxu0 0.0
    %390 = vmatprep.subr.mxu0 0.0
    %391 = vmatpush1.xpose.msra.mxu0 0.0
    %392 = vmatprep.subr.mxu0 0.0
    %393 = vmatpush1.xpose.msra.mxu0 0.0
    %394 = vmatprep.subr.mxu0 0.0
    %395 = vmatpush1.xpose.msra.mxu0 0.0
    %396 = vmatprep.subr.mxu0 0.0
    %397 = vmatpush1.xpose.msra.mxu0 0.0
    %398 = vmatprep.subr.mxu0 0.0
    %399 = vmatpush1.xpose.msra.mxu0 0.0
    %400 = vmatprep.subr.mxu0 0.0
    %401 = vmatpush1.xpose.msra.mxu0 0.0
    %402 = vmatprep.subr.mxu0 0.0
    %403 = vmatpush1.xpose.msra.mxu0 %v376
    %404 = vmatprep.subr.mxu0 0.0
    %405 = vmatpush1.xpose.msra.mxu0 %v373
    %406 = vmatprep.subr.mxu0 0.0
    %407 = vmatpush1.xpose.msra.mxu0 %v370
    %408 = vmatprep.subr.mxu0 0.0
    %409 = vmatpush1.xpose.msra.mxu0 %v367
    %410 = vmatprep.subr.mxu0 0.0
    %411 = vmatpush2.xpose.msra.mxu0 0.0
    %412 = vmatprep.subr.mxu0 0.0
    %413 = vmatpush2.xpose.msra.mxu0 0.0
    %414 = vmatprep.subr.mxu0 0.0
    %415 = vmatpush2.xpose.msra.mxu0 0.0
    %416 = vmatprep.subr.mxu0 0.0
    %417 = vmatpush2.xpose.msra.mxu0 0.0
    %418 = vmatprep.subr.mxu0 0.0
    %419 = vmatpush2.xpose.msra.mxu0 0.0
    %420 = vmatprep.subr.mxu0 0.0
    %421 = vmatpush2.xpose.msra.mxu0 0.0
    %422 = vmatprep.subr.mxu0 0.0
    %423 = vmatpush2.xpose.msra.mxu0 0.0
    %424 = vmatprep.subr.mxu0 0.0
    %425 = vmatpush2.xpose.msra.mxu0 0.0
    %426 = vmatprep.subr.mxu0 0.0
    %427 = vmatpush2.xpose.msra.mxu0 0.0
    %428 = vmatprep.subr.mxu0 0.0
    %429 = vmatpush2.xpose.msra.mxu0 0.0
    %430 = vmatprep.subr.mxu0 0.0
    %431 = vmatpush2.xpose.msra.mxu0 0.0
    %432 = vmatprep.subr.mxu0 0.0
    %433 = vmatpush2.xpose.msra.mxu0 0.0
    %434 = vmatprep.subr.mxu0 0.0
    %435 = vmatpush2.xpose.msra.mxu0 0.0
    %436 = vmatprep.subr.mxu0 0.0
    %437 = vmatpush2.xpose.msra.mxu0 0.0
    %438 = vmatprep.subr.mxu0 0.0
    %439 = vmatpush2.xpose.msra.mxu0 0.0
    %440 = vmatprep.subr.mxu0 0.0
    %441 = vmatpush2.xpose.msra.mxu0 0.0
    %442 = vmatprep.mubr.f32.mxu0 0.0
    %443 = vmatmul.mubr.f32.gmra.mxu0 %v364
    %v444 = vpop.f32.mrf.mxu0
    %v445 = vadd.f32 %v360, %v444
    %v446 = vpop.f32.mrf.mxu0
    %447 = vdwg.mxu0
    %v448 = vmul.f32 %v445, 0.5
    %v449 = vtanh.pop %v448
    %v450 = vadd.f32 %v449, 1.0
    %v451 = vmul.f32 %v450, 0.5
    %v452 = vld [vmem:[%s13] sm:$0x1]
    %v453 = vld [vmem:[%s14] sm:$0x1]
    %vm454 = vcmp.gt.f32.partialorder %v453, 20.0
    %v455 = vmin.f32 %v453, 20.0
    %v456 = vmul.f32 %v455, 1.442695
    %v457 = vpow.pop %v456
    %v458 = vadd.f32 %v457, 1.0
    %v459 = vlog2.pop %v458
    %v460 = vmul.f32 %v459, 0.6931472
    %v461 = vmul.f32 -0.5, %v457
    %v462 = vadd.f32 %v461, 1.0
    %v463 = vmul.f32 %v462, %v457
    %v464 = vand.u32 2147483647, %v457
    %vm465 = vcmp.lt.f32.partialorder %v464, 0.0004427343
    %v466 = vsel %vm465, %v463, %v460
    %v467 = vsel %vm454, %v453, %v466
    %v468 = vld [vmem:[%s15] sm:$0x1]
    %v469 = vmul.f32 %v467, %v468
    %v470 = vadd.f32 %v452, %v469
    %v471 = vld [vmem:[#allocation2] sm:$0x1]
    %v472 = vld [vmem:[#allocation3] sm:$0x1]
    %vm473 = vcmp.gt.f32.partialorder %v472, 20.0
    %v474 = vmin.f32 %v472, 20.0
    %v475 = vmul.f32 %v474, 1.442695
    %v476 = vpow.pop %v475
    %v477 = vadd.f32 %v476, 1.0
    %v478 = vlog2.pop %v477
    %v479 = vmul.f32 %v478, 0.6931472
    %v480 = vmul.f32 -0.5, %v476
    %v481 = vadd.f32 %v480, 1.0
    %v482 = vmul.f32 %v481, %v476
    %v483 = vand.u32 2147483647, %v476
    %vm484 = vcmp.lt.f32.partialorder %v483, 0.0004427343
    %v485 = vsel %vm484, %v482, %v479
    %v486 = vsel %vm473, %v472, %v485
    %v487 = vld [vmem:[#allocation4] sm:$0x1]
    %v488 = vmul.f32 %v486, %v487
    %v489 = vadd.f32 %v471, %v488
    %491 = vset.pattern.permute.xlu0 0
    %492 = vperm.xlu0 %491, %v489
    %v493 = vpop.permute.xlu0 %492
    %v495 = vlaneseq
    %v496 = vshrl.u32 %v495, 7
    %v497 = vsub.s32 0, %v496
    %v498 = vrot.slane %v493, %v497
    %v500 = vsel %vm362, %v470, 0
    %v503 = vsel %vm362, %v451, 0
    %505 = vmatprep.subr.mxu0 0.0
    %506 = vmatpush1.xpose.msra.mxu0 0.0
    %507 = vmatprep.subr.mxu0 0.0
    %508 = vmatpush1.xpose.msra.mxu0 0.0
    %509 = vmatprep.subr.mxu0 0.0
    %510 = vmatpush1.xpose.msra.mxu0 0.0
    %511 = vmatprep.subr.mxu0 0.0
    %512 = vmatpush1.xpose.msra.mxu0 0.0
    %513 = vmatprep.subr.mxu0 0.0
    %514 = vmatpush1.xpose.msra.mxu0 0.0
    %515 = vmatprep.subr.mxu0 0.0
    %516 = vmatpush1.xpose.msra.mxu0 0.0
    %517 = vmatprep.subr.mxu0 0.0
    %518 = vmatpush1.xpose.msra.mxu0 0.0
    %519 = vmatprep.subr.mxu0 0.0
    %520 = vmatpush1.xpose.msra.mxu0 0.0
    %521 = vmatprep.subr.mxu0 0.0
    %522 = vmatpush1.xpose.msra.mxu0 0.0
    %523 = vmatprep.subr.mxu0 0.0
    %524 = vmatpush1.xpose.msra.mxu0 0.0
    %525 = vmatprep.subr.mxu0 0.0
    %526 = vmatpush1.xpose.msra.mxu0 0.0
    %527 = vmatprep.subr.mxu0 0.0
    %528 = vmatpush1.xpose.msra.mxu0 0.0
    %529 = vmatprep.subr.mxu0 0.0
    %530 = vmatpush1.xpose.msra.mxu0 0.0
    %531 = vmatprep.subr.mxu0 0.0
    %532 = vmatpush1.xpose.msra.mxu0 0.0
    %533 = vmatprep.subr.mxu0 0.0
    %534 = vmatpush1.xpose.msra.mxu0 0.0
    %535 = vmatprep.subr.mxu0 0.0
    %536 = vmatpush1.xpose.msra.mxu0 %v503
    %537 = vmatprep.subr.mxu0 0.0
    %538 = vmatpush2.xpose.msra.mxu0 0.0
    %539 = vmatprep.subr.mxu0 0.0
    %540 = vmatpush2.xpose.msra.mxu0 0.0
    %541 = vmatprep.subr.mxu0 0.0
    %542 = vmatpush2.xpose.msra.mxu0 0.0
    %543 = vmatprep.subr.mxu0 0.0
    %544 = vmatpush2.xpose.msra.mxu0 0.0
    %545 = vmatprep.subr.mxu0 0.0
    %546 = vmatpush2.xpose.msra.mxu0 0.0
    %547 = vmatprep.subr.mxu0 0.0
    %548 = vmatpush2.xpose.msra.mxu0 0.0
    %549 = vmatprep.subr.mxu0 0.0
    %550 = vmatpush2.xpose.msra.mxu0 0.0
    %551 = vmatprep.subr.mxu0 0.0
    %552 = vmatpush2.xpose.msra.mxu0 0.0
    %553 = vmatprep.subr.mxu0 0.0
    %554 = vmatpush2.xpose.msra.mxu0 0.0
    %555 = vmatprep.subr.mxu0 0.0
    %556 = vmatpush2.xpose.msra.mxu0 0.0
    %557 = vmatprep.subr.mxu0 0.0
    %558 = vmatpush2.xpose.msra.mxu0 0.0
    %559 = vmatprep.subr.mxu0 0.0
    %560 = vmatpush2.xpose.msra.mxu0 0.0
    %561 = vmatprep.subr.mxu0 0.0
    %562 = vmatpush2.xpose.msra.mxu0 0.0
    %563 = vmatprep.subr.mxu0 0.0
    %564 = vmatpush2.xpose.msra.mxu0 0.0
    %565 = vmatprep.subr.mxu0 0.0
    %566 = vmatpush2.xpose.msra.mxu0 0.0
    %567 = vmatprep.subr.mxu0 0.0
    %568 = vmatpush2.xpose.msra.mxu0 0.0
    %569 = vmatprep.mubr.f32.mxu0 0.0
    %570 = vmatmul.mubr.f32.gmra.mxu0 %v500
    %v571 = vpop.f32.mrf.mxu0
    %v572 = vadd.f32 %v498, %v571
    %v573 = vpop.f32.mrf.mxu0
    %574 = vdwg.mxu0
    %vm575 = vcmask 57344
    %576 = vst.msk [vmem:[#allocation5] sm:$0x1] %vm575, %v572
    // Predicated region
    $region78: #{tpu_custom_call.1} parent=1 // pred_check
      _
    $region79: #{tpu_custom_call.1} parent=1 // pred_check_branch
      %578 = sbr.rel (0) target = $region81
    $region80: #{tpu_custom_call.1} parent=1 // pred_region
      %s580 = ssub.s32 16, 16
      %581 = vsyncadd [#allocation6], %s580
      %s583 = sshll.u32 [#allocation5], 4
      %s584 = int_to_ptr.vmem [resolvable:$true] %s583
      %586 = dma.vmem_to_hbm [thread:$0]  %s584, 16, %s19, [#allocation6]
    $region81: #{tpu_custom_call.1} parent=1 // pred_fallthru
      _
    // Predicated region
    $region82: #{tpu_custom_call.1} parent=1 // pred_check
      _
    $region83: #{tpu_custom_call.1} parent=1 // pred_check_branch
      %588 = sbr.rel (0) target = $region85
    $region84: #{tpu_custom_call.1} parent=1 // pred_region
      %589 = dma.done [#allocation6], 16
    $region85: #{tpu_custom_call.1} parent=1 // pred_fallthru
      _
    %590 = vsyncpa [#allocation6], 1

</llo_original>
